<compile_context>
chip_gen: v6e
topology: v6e:2x2x1
jax: 0.10.0
libtpu: 0.0.40
codegen_flags: <defaults>
</compile_context>

<pallas_src>
import math

import jax
import jax.numpy as jnp
from jax.experimental import pallas as pl
from jax.experimental.pallas import tpu as pltpu


def _student_kernel(xt_ref, ws_ref, vcol_ref, o_ref):
    # xt_ref:   (N, tb)  tile of x.T   -- batch in the lane axis (lane-dense)
    # ws_ref:   (K, N)   first-layer weights, pre-scaled by 1/(sqrt(N)*sqrt(2))
    # vcol_ref: (K, 1)   second-layer weights as a column
    # o_ref:    (1, tb)  lane-dense output tile
    xt = xt_ref[...]
    ws = ws_ref[...]

    # pre-activation (scaling already folded into ws): (K, tb)
    z = jnp.dot(ws, xt, preferred_element_type=jnp.float32)
    # erf activation (the module's g(z) = erf(z / sqrt(2)); the 1/sqrt(2) is
    # already folded into ws).
    h = jax.lax.erf(z)
    # second layer: weighted sum over K hidden units (VPU mul + sublane reduce)
    o_ref[...] = jnp.sum(h * vcol_ref[...], axis=0, keepdims=True)


def student_forward(x, w, v, *, block_b=1024):
    """x: (B, N) float32, w: (K, N), v: (1, K). Returns (B, 1) float32."""
    B, N = x.shape
    K, _ = w.shape
    assert v.shape == (1, K)

    # Fold both linear scalings into the first-layer weights (host-side,
    # one-time, weights are constant across all grid steps).
    scale = 1.0 / (math.sqrt(N) * math.sqrt(2.0))
    ws = jnp.asarray(w, jnp.float32) * scale          # (K, N)
    vcol = jnp.asarray(v, jnp.float32).T              # (K, 1)
    xt = jnp.asarray(x, jnp.float32).T                # (N, B): batch -> lanes
    # TODO(synk): optionally stream xt/ws as bfloat16 (f32 accumulation kept)
    # to halve HBM traffic if the precision loss is acceptable.

    tb = min(block_b, B)                              # batch tile (lane axis)
    grid = (pl.cdiv(B, tb),)

    out = pl.pallas_call(
        _student_kernel,
        out_shape=jax.ShapeDtypeStruct((1, B), jnp.float32),
        grid_spec=pltpu.PrefetchScalarGridSpec(
            num_scalar_prefetch=0,
            grid=grid,
            in_specs=[
                pl.BlockSpec((N, tb), lambda i: (0, i)),   # x.T tile (streamed)
                pl.BlockSpec((K, N), lambda i: (0, 0)),    # scaled w (resident)
                pl.BlockSpec((K, 1), lambda i: (0, 0)),    # v column (resident)
            ],
            out_specs=pl.BlockSpec((1, tb), lambda i: (0, i)),
        ),
        compiler_params=pltpu.CompilerParams(
            dimension_semantics=("parallel",),   # shards batch tiles on v7x
        ),
    )(xt, ws, vcol)

    # (1, B) and (B, 1) share the same row-major layout: free reshape.
    return out.reshape(B, 1)


def student_forward_ref(x, w, v):
    """Pure-JAX reference matching the PyTorch module exactly."""
    N = x.shape[-1]
    z = (x @ w.T) / math.sqrt(N)
    h = jax.lax.erf(z / math.sqrt(2.0))
    return h @ v.T


if __name__ == "__main__":
    # Small shapes consistent with the module: N input dims, K hidden nodes.
    # B chosen to exercise multiple grid steps plus a partial (masked) tile.
    B, N, K = 300, 32, 16

    key = jax.random.PRNGKey(0)
    kx, kw, kv = jax.random.split(key, 3)

    x = jax.random.normal(kx, (B, N), dtype=jnp.float32)
    w = jax.random.normal(kw, (K, N), dtype=jnp.float32)   # fc1.weight
    v = jax.random.normal(kv, (1, K), dtype=jnp.float32)   # fc2.weight

    ref = student_forward_ref(x, w, v)

    # Multi-step grid (tb=128 -> 3 tiles, last one partial).
    out_tiled = jax.block_until_ready(student_forward(x, w, v, block_b=128))
    assert out_tiled.shape == (B, 1)
    assert jnp.allclose(out_tiled, ref, atol=1e-4, rtol=1e-4), "tiled mismatch"

    # Default large-tile path (single block covering the whole batch here).
    out_default = jax.block_until_ready(student_forward(x, w, v))
    assert out_default.shape == (B, 1)
    assert jnp.allclose(out_default, ref, atol=1e-4, rtol=1e-4), "default mismatch"

    print("KERNEL_OK")
</pallas_src>

<mosaic_0001>
module attributes {stable_mosaic.version = 11 : i64} {
  func.func @_student_kernel(%arg0: i32, %arg1: memref<32x128xf32, #tpu.memory_space<vmem>>, %arg2: memref<16x32xf32, #tpu.memory_space<vmem>>, %arg3: memref<16x1xf32, #tpu.memory_space<vmem>>, %arg4: memref<1x128xf32, #tpu.memory_space<vmem>>) attributes {dimension_semantics = [#tpu.dimension_semantics<parallel>], iteration_bounds = array<i64: 3>, scalar_prefetch = 0 : i64, scratch_operands = 0 : i64, tpu.core_type = #tpu.core_type<tc>, window_params = [{transform_indices = @transform_0, window_bounds = array<i64: 32, 128>}, {pipeline_mode = #tpu.pipeline_mode<synchronous>, transform_indices = @transform_1, window_bounds = array<i64: 16, 32>}, {pipeline_mode = #tpu.pipeline_mode<synchronous>, transform_indices = @transform_2, window_bounds = array<i64: 16, 1>}, {transform_indices = @transform_3, window_bounds = array<i64: 1, 128>}]} {
    %c0 = arith.constant 0 : index
    %c0_0 = arith.constant 0 : index
    %0 = vector.load %arg1[%c0, %c0_0] : memref<32x128xf32, #tpu.memory_space<vmem>>, vector<32x128xf32>
    %c0_1 = arith.constant 0 : index
    %c0_2 = arith.constant 0 : index
    %1 = vector.load %arg2[%c0_1, %c0_2] : memref<16x32xf32, #tpu.memory_space<vmem>>, vector<16x32xf32>
    %cst = arith.constant dense<0.000000e+00> : vector<16x128xf32>
    %2 = tpu.matmul %1, %0, %cst {dimension_numbers = #tpu.dot_dimension_numbers<[1], [0], [0], [1], [0, 0, 1, 1], [], []>} : vector<16x32xf32>, vector<32x128xf32>, vector<16x128xf32> -> vector<16x128xf32>
    %3 = math.erf %2 : vector<16x128xf32>
    %c0_3 = arith.constant 0 : index
    %c0_4 = arith.constant 0 : index
    %4 = vector.load %arg3[%c0_3, %c0_4] : memref<16x1xf32, #tpu.memory_space<vmem>>, vector<16x1xf32>
    %5 = vector.broadcast %4 : vector<16x1xf32> to vector<16x128xf32>
    %6 = arith.mulf %3, %5 : vector<16x128xf32>
    %cst_5 = arith.constant dense<0.000000e+00> : vector<128xf32>
    %7 = vector.multi_reduction <add>, %6, %cst_5 [0] : vector<16x128xf32> to vector<128xf32>
    %8 = vector.shape_cast %7 : vector<128xf32> to vector<1x128xf32>
    %c0_6 = arith.constant 0 : index
    %c0_7 = arith.constant 0 : index
    %9 = vector.load %arg4[%c0_6, %c0_7] : memref<1x128xf32, #tpu.memory_space<vmem>>, vector<1x128xf32>
    tpu.vector_store %arg4[%c0_6, %c0_7], %8 {strides = array<i32>} : memref<1x128xf32, #tpu.memory_space<vmem>>, vector<1x128xf32>,
    return
  }
  func.func @transform_0(%arg0: i32) -> (i32, i32) {
    %c0_i32 = arith.constant 0 : i32
    %c0_i32_0 = arith.constant 0 : i32
    return %c0_i32, %arg0 : i32, i32
  }
  func.func @transform_1(%arg0: i32) -> (i32, i32) {
    %c0_i32 = arith.constant 0 : i32
    %c0_i32_0 = arith.constant 0 : i32
    %c0_i32_1 = arith.constant 0 : i32
    return %c0_i32, %c0_i32_0 : i32, i32
  }
  func.func @transform_2(%arg0: i32) -> (i32, i32) {
    %c0_i32 = arith.constant 0 : i32
    %c0_i32_0 = arith.constant 0 : i32
    %c0_i32_1 = arith.constant 0 : i32
    return %c0_i32, %c0_i32_0 : i32, i32
  }
  func.func @transform_3(%arg0: i32) -> (i32, i32) {
    %c0_i32 = arith.constant 0 : i32
    %c0_i32_0 = arith.constant 0 : i32
    return %c0_i32, %arg0 : i32, i32
  }
}

</mosaic_0001>

<llo_original>
// kernel: tpu_custom_call.1
$region0: #{tpu_custom_call.1}
  #allocation0 [shape = 'u32[]', space=smem, size = 0x4, offset = 0x4, fixed_abs, tag = 'smem constant byte address 0x4 - core index']
  #allocation1 [shape = 'u32[144,128]{1,0:T(1,128)}', space=vmem, size = 0x12000, scoped, tag = 'internal scratch']
  %s0 = inlined_call_operand.hbm [shape: f32[32,300], index: 0, kind: input, shape index: {}]
  %s1 = inlined_call_operand.vmem [shape: f32[16,32], index: 1, kind: input, shape index: {}]
  %s2 = inlined_call_operand.vmem [shape: f32[16,1], index: 2, kind: input, shape index: {}]
  %s3 = inlined_call_operand.hbm [shape: f32[1,300], index: 3, kind: output, shape index: {}]
  %s4 = sld [smem:[#allocation0]]
  $region49: #{tpu_custom_call.1} parent=0
    _
  %s6 = ssub.s32 1, %s4
  %s7 = scalar_select 0, %s6, %s4
  $region1: #{tpu_custom_call.1} parent=0
    #allocation2 [shape = 'u8[32768]{0}', space=vmem, size = 0x8000, scoped, tag = 'input window, operand 0']
    #allocation3 [shape = 's32[2]{0}', space=sflag, size = 0x8, scoped, tag = 'scoped memory for tpu_custom_call.1']
    #allocation4 [shape = 's32[2]{0}', space=sflag, size = 0x8, scoped, tag = 'scoped memory for tpu_custom_call.1']
    #allocation5 [shape = 'u8[1024]{0}', space=vmem, size = 0x400, scoped, tag = 'output window, operand 0']
    %8 = vsyncpa [#allocation3], 0
    %s9 = scalar_lea.sflag [#allocation3], 1
    %10 = vsyncpa %s9, 0
    %11 = vsyncpa [#allocation4], 0
    %s12 = scalar_lea.sflag [#allocation4], 1
    %13 = vsyncpa %s12, 0
    loop: start=0, step=1, limit=5
    $region2: #{tpu_custom_call.1} parent=1 // loop_pre_header
      _
    $region3: #{tpu_custom_call.1} parent=1 // loop_header
      %s15 = sphi 0, %s19
      %p16 = scmp.ge.s32.totalorder %s15, 5
      %s25 = sphi 0, %s27
      %s28 = sphi 0, %s25
      %s29 = sphi 0, %s28
      %s45 = sphi 0, %s29
      %s49 = sphi 0, %s49
      %s51 = sphi 0, %s49
      %s52 = sphi 0, %s51
      %s66 = sphi 0, %s52
      %s70 = sphi 0, %s70
      %s72 = sphi 0, %s70
      %s73 = sphi 0, %s72
      %s87 = sphi 0, %s73
      %s93 = sphi 0, %s95
      %s96 = sphi 0, %s93
      %s97 = sphi 0, %s96
      %s113 = sphi 0, %s97
    $region4: #{tpu_custom_call.1} parent=1 // loop_header_branch
      %18 = sbr.rel (%p16) target = $region8
    $region5: #{tpu_custom_call.1} parent=1 // loop_body
      %s20 = ssub.s32 %s15, 1
      %s21 = ssub.s32 %s15, 2
      %s22 = sadd.s32 %s15, 1
      %s23 = ssub.s32 %s15, %s22
      %p24 = scmp.eq.s32.totalorder %s23, 0
      %s26 = sadd.s32 %s25, 1
      %s27 = scalar_select %p24, %s25, %s26
      %p30 = pneg %p24
      %p31 = scmp.eq.s32.totalorder %s15, 2
      %p32 = por %p30, %p31
      %p33 = scmp.ne.s32.totalorder %s25, %s28
      %p34 = scmp.eq.s32.totalorder %s15, 0
      %p35 = por %p33, %p34
      %p36 = scmp.ne.s32.totalorder %s25, %s28
      %p37 = scmp.eq.s32.totalorder %s20, 2
      %p38 = por %p36, %p37
      %p39 = scmp.ne.s32.totalorder %s28, %s29
      %p40 = scmp.eq.s32.totalorder %s20, 0
      %p41 = por %p39, %p40
      %p42 = scmp.ne.s32.totalorder %s28, %s29
      %p43 = scmp.eq.s32.totalorder %s21, 2
      %p44 = por %p42, %p43
      %p46 = scmp.ne.s32.totalorder %s29, %s45
      %p47 = scmp.eq.s32.totalorder %s21, 0
      %p48 = por %p46, %p47
      %s50 = sadd.s32 %s49, 1
      %p53 = scmp.eq.s32.totalorder %s15, 2
      %p54 = scmp.ne.s32.totalorder %s49, %s51
      %p55 = scmp.eq.s32.totalorder %s15, 0
      %p56 = por %p54, %p55
      %p57 = scmp.ne.s32.totalorder %s49, %s51
      %p58 = scmp.eq.s32.totalorder %s20, 2
      %p59 = por %p57, %p58
      %p60 = scmp.ne.s32.totalorder %s51, %s52
      %p61 = scmp.eq.s32.totalorder %s20, 0
      %p62 = por %p60, %p61
      %p63 = scmp.ne.s32.totalorder %s51, %s52
      %p64 = scmp.eq.s32.totalorder %s21, 2
      %p65 = por %p63, %p64
      %p67 = scmp.ne.s32.totalorder %s52, %s66
      %p68 = scmp.eq.s32.totalorder %s21, 0
      %p69 = por %p67, %p68
      %s71 = sadd.s32 %s70, 1
      %p74 = scmp.eq.s32.totalorder %s15, 2
      %p75 = scmp.ne.s32.totalorder %s70, %s72
      %p76 = scmp.eq.s32.totalorder %s15, 0
      %p77 = por %p75, %p76
      %p78 = scmp.ne.s32.totalorder %s70, %s72
      %p79 = scmp.eq.s32.totalorder %s20, 2
      %p80 = por %p78, %p79
      %p81 = scmp.ne.s32.totalorder %s72, %s73
      %p82 = scmp.eq.s32.totalorder %s20, 0
      %p83 = por %p81, %p82
      %p84 = scmp.ne.s32.totalorder %s72, %s73
      %p85 = scmp.eq.s32.totalorder %s21, 2
      %p86 = por %p84, %p85
      %p88 = scmp.ne.s32.totalorder %s73, %s87
      %p89 = scmp.eq.s32.totalorder %s21, 0
      %p90 = por %p88, %p89
      %s91 = ssub.s32 %s15, %s22
      %p92 = scmp.eq.s32.totalorder %s91, 0
      %s94 = sadd.s32 %s93, 1
      %s95 = scalar_select %p92, %s93, %s94
      %p98 = pneg %p92
      %p99 = scmp.eq.s32.totalorder %s15, 2
      %p100 = por %p98, %p99
      %p101 = scmp.ne.s32.totalorder %s93, %s96
      %p102 = scmp.eq.s32.totalorder %s15, 0
      %p103 = por %p101, %p102
      %p104 = scmp.ne.s32.totalorder %s93, %s96
      %p105 = scmp.eq.s32.totalorder %s20, 2
      %p106 = por %p104, %p105
      %p107 = scmp.ne.s32.totalorder %s96, %s97
      %p108 = scmp.eq.s32.totalorder %s20, 0
      %p109 = por %p107, %p108
      %p110 = scmp.ne.s32.totalorder %s96, %s97
      %p111 = scmp.eq.s32.totalorder %s21, 2
      %p112 = por %p110, %p111
      %p114 = scmp.ne.s32.totalorder %s97, %s113
      %p115 = scmp.eq.s32.totalorder %s21, 0
      %p116 = por %p114, %p115
      %p117 = scmp.le.s32.totalorder 1, %s15
      %p118 = scmp.lt.s32.totalorder %s15, 4
      %p119 = pnand %p117, %p118
      %p120 = pneg %p119
      // Predicated region
      $region9: #{tpu_custom_call.1} parent=5 // pred_check
        _
      $region10: #{tpu_custom_call.1} parent=5 // pred_check_branch
        %122 = sbr.rel (%p119) target = $region12
      $region11: #{tpu_custom_call.1} parent=5 // pred_region
        %s123 = ssub.s32 %s15, 1
        // Predicated region
        $region13: #{tpu_custom_call.1} parent=11 // pred_check
          %p124 = pneg %p62
        $region14: #{tpu_custom_call.1} parent=11 // pred_check_branch
          %126 = sbr.rel (%p124) target = $region16
        $region15: #{tpu_custom_call.1} parent=11 // pred_region
          _
        $region16: #{tpu_custom_call.1} parent=11 // pred_fallthru
          _
        // Predicated region
        $region17: #{tpu_custom_call.1} parent=11 // pred_check
          %p127 = pneg %p83
        $region18: #{tpu_custom_call.1} parent=11 // pred_check_branch
          %129 = sbr.rel (%p127) target = $region20
        $region19: #{tpu_custom_call.1} parent=11 // pred_region
          _
        $region20: #{tpu_custom_call.1} parent=11 // pred_fallthru
          _
      $region12: #{tpu_custom_call.1} parent=5 // pred_fallthru
        _
      %p130 = scmp.lt.s32.totalorder %s15, 3
      // Predicated region
      $region21: #{tpu_custom_call.1} parent=5 // pred_check
        %p131 = pneg %p130
      $region22: #{tpu_custom_call.1} parent=5 // pred_check_branch
        %133 = sbr.rel (%p131) target = $region24
      $region23: #{tpu_custom_call.1} parent=5 // pred_region
        // Predicated region
        $region25: #{tpu_custom_call.1} parent=23 // pred_check
          %p134 = pneg %p35
        $region26: #{tpu_custom_call.1} parent=23 // pred_check_branch
          %136 = sbr.rel (%p134) target = $region28
        $region27: #{tpu_custom_call.1} parent=23 // pred_region
          %s137 = sand.u32 %s25, 1
          %s138 = scalar_lea.sflag [#allocation3], %s137
          %s139 = sand.u32 %s25, 1
          %s140 = smul.addr %s139, 32
          %s141 = scalar_lea.vmem [#allocation2], %s140
          %s143 = ssub.s32 512, 512
          %144 = vsyncadd %s138, %s143
          %s145 = smul.addr %s15, 128
          %s146 = scalar_lea.hbm %s0, %s145
          %s147 = sshll.u32 %s141, 4
          %s148 = int_to_ptr.vmem [resolvable:$true] %s147
          %153 = dma.hbm_to_vmem [thread:$0]  %s146, 512, %s148, %s138, 384, 128, 8
        $region28: #{tpu_custom_call.1} parent=23 // pred_fallthru
          _
      $region24: #{tpu_custom_call.1} parent=5 // pred_fallthru
        _
      %p154 = scmp.le.s32.totalorder 1, %s15
      %p155 = scmp.lt.s32.totalorder %s15, 4
      %p156 = pnand %p154, %p155
      %p157 = pneg %p156
      // Predicated region
      $region29: #{tpu_custom_call.1} parent=5 // pred_check
        _
      $region30: #{tpu_custom_call.1} parent=5 // pred_check_branch
        %159 = sbr.rel (%p156) target = $region32
      $region31: #{tpu_custom_call.1} parent=5 // pred_region
        %s160 = ssub.s32 %s15, 1
        %s161 = sand.u32 %s28, 1
        %s162 = scalar_lea.sflag [#allocation3], %s161
        %s163 = sand.u32 %s28, 1
        %s164 = smul.addr %s163, 32
        %s165 = scalar_lea.vmem [#allocation2], %s164
        // Predicated region
        $region33: #{tpu_custom_call.1} parent=31 // pred_check
          %p166 = pneg %p41
        $region34: #{tpu_custom_call.1} parent=31 // pred_check_branch
          %168 = sbr.rel (%p166) target = $region36
        $region35: #{tpu_custom_call.1} parent=31 // pred_region
          %169 = dma.done %s162, 512
        $region36: #{tpu_custom_call.1} parent=31 // pred_fallthru
          _
        %s170 = sand.u32 %s28, 1
        %s171 = scalar_lea.sflag [#allocation3], %s170
        %s172 = sand.u32 %s28, 1
        %s173 = smul.addr %s172, 32
        %s174 = scalar_lea.vmem [#allocation2], %s173
        %p175 = pneg %p41
        %p176 = pneg %p38
        %p177 = pneg %p62
        %p178 = pneg %p59
        %p179 = pneg %p83
        %p180 = pneg %p80
        %p181 = pneg %p109
        %p182 = pneg %p106
        %s183 = sand.u32 %s96, 1
        %s184 = scalar_lea.sflag [#allocation4], %s183
        %s185 = sand.u32 %s96, 1
        %s186 = scalar_lea.vmem [#allocation5], %s185
        %v187 = vld [vmem:[%s165] sm:$0xff]
        %v188 = vld [vmem:[%s165 + $0x8] sm:$0xff]
        %v189 = vld [vmem:[%s165 + $0x10] sm:$0xff]
        %v190 = vld [vmem:[%s165 + $0x18] sm:$0xff]
        %v191 = vld [vmem:[%s1] sm:$0xff]
        %v192 = vld [vmem:[%s1 + $0x8] sm:$0xff]
        %vm193 = vcmask 261120
        %v195 = vsel %vm193, %v191, 0
        %v198 = vsel %vm193, %v192, 0
        %200 = vmatprep.subr.mxu0 0.0
        %201 = vmatpush1.msra.mxu0 0.0
        %202 = vmatprep.subr.mxu0 0.0
        %203 = vmatpush1.msra.mxu0 0.0
        %204 = vmatprep.subr.mxu0 0.0
        %205 = vmatpush1.msra.mxu0 0.0
        %206 = vmatprep.subr.mxu0 0.0
        %207 = vmatpush1.msra.mxu0 0.0
        %208 = vmatprep.subr.mxu0 0.0
        %209 = vmatpush1.msra.mxu0 0.0
        %210 = vmatprep.subr.mxu0 0.0
        %211 = vmatpush1.msra.mxu0 0.0
        %212 = vmatprep.subr.mxu0 0.0
        %213 = vmatpush1.msra.mxu0 0.0
        %214 = vmatprep.subr.mxu0 0.0
        %215 = vmatpush1.msra.mxu0 0.0
        %216 = vmatprep.subr.mxu0 0.0
        %217 = vmatpush1.msra.mxu0 0.0
        %218 = vmatprep.subr.mxu0 0.0
        %219 = vmatpush1.msra.mxu0 0.0
        %220 = vmatprep.subr.mxu0 0.0
        %221 = vmatpush1.msra.mxu0 0.0
        %222 = vmatprep.subr.mxu0 0.0
        %223 = vmatpush1.msra.mxu0 0.0
        %224 = vmatprep.subr.mxu0 0.0
        %225 = vmatpush1.msra.mxu0 %v190
        %226 = vmatprep.subr.mxu0 0.0
        %227 = vmatpush1.msra.mxu0 %v189
        %228 = vmatprep.subr.mxu0 0.0
        %229 = vmatpush1.msra.mxu0 %v188
        %230 = vmatprep.subr.mxu0 0.0
        %231 = vmatpush1.msra.mxu0 %v187
        %232 = vmatprep.subr.mxu0 0.0
        %233 = vmatpush2.msra.mxu0 0.0
        %234 = vmatprep.subr.mxu0 0.0
        %235 = vmatpush2.msra.mxu0 0.0
        %236 = vmatprep.subr.mxu0 0.0
        %237 = vmatpush2.msra.mxu0 0.0
        %238 = vmatprep.subr.mxu0 0.0
        %239 = vmatpush2.msra.mxu0 0.0
        %240 = vmatprep.subr.mxu0 0.0
        %241 = vmatpush2.msra.mxu0 0.0
        %242 = vmatprep.subr.mxu0 0.0
        %243 = vmatpush2.msra.mxu0 0.0
        %244 = vmatprep.subr.mxu0 0.0
        %245 = vmatpush2.msra.mxu0 0.0
        %246 = vmatprep.subr.mxu0 0.0
        %247 = vmatpush2.msra.mxu0 0.0
        %248 = vmatprep.subr.mxu0 0.0
        %249 = vmatpush2.msra.mxu0 0.0
        %250 = vmatprep.subr.mxu0 0.0
        %251 = vmatpush2.msra.mxu0 0.0
        %252 = vmatprep.subr.mxu0 0.0
        %253 = vmatpush2.msra.mxu0 0.0
        %254 = vmatprep.subr.mxu0 0.0
        %255 = vmatpush2.msra.mxu0 0.0
        %256 = vmatprep.subr.mxu0 0.0
        %257 = vmatpush2.msra.mxu0 0.0
        %258 = vmatprep.subr.mxu0 0.0
        %259 = vmatpush2.msra.mxu0 0.0
        %260 = vmatprep.subr.mxu0 0.0
        %261 = vmatpush2.msra.mxu0 0.0
        %262 = vmatprep.subr.mxu0 0.0
        %263 = vmatpush2.msra.mxu0 0.0
        %264 = vmatprep.mubr.f32.mxu0 0.0
        %265 = vmatmul.mubr.f32.gmra.mxu0 %v195
        %v266 = vpop.f32.mrf.mxu0
        %v267 = vadd.f32 0.0, %v266
        %v268 = vpop.f32.mrf.mxu0
        %269 = vmatprep.mubr.f32.mxu0 0.0
        %270 = vmatmul.mubr.f32.gmra.mxu0 %v198
        %v271 = vpop.f32.mrf.mxu0
        %v272 = vadd.f32 0.0, %v271
        %v273 = vpop.f32.mrf.mxu0
        %274 = vdwg.mxu0
        %v275 = verf.f32.pop %v267
        %v276 = verf.f32.pop %v272
        %v277 = vld [vmem:[%s2] sm:$0xff]
        %v278 = vld [vmem:[%s2 + $0x8] sm:$0xff]
        %280 = vset.pattern.permute.xlu0 0
        %281 = vperm.xlu0 %280, %v277
        %v282 = vpop.permute.xlu0 %281
        %285 = vset.pattern.permute.xlu0 0
        %286 = vperm.xlu0 %285, %v278
        %v287 = vpop.permute.xlu0 %286
        %v289 = vmul.f32 %v275, %v282
        %v290 = vmul.f32 %v276, %v287
        %v291 = vadd.f32 %v289, %v290
        %v292 = vrot.slane %v291, 4
        %v293 = vadd.f32 %v291, %v292
        %v294 = vrot.slane %v293, 2
        %v295 = vadd.f32 %v293, %v294
        %v296 = vrot.slane %v295, 1
        %v297 = vadd.f32 %v295, %v296
        %298 = vst [vmem:[%s186] sm:$0x1] %v297
        %s299 = sand.u32 %s96, 1
        %s300 = scalar_lea.sflag [#allocation4], %s299
        %s301 = sand.u32 %s96, 1
        %s302 = scalar_lea.vmem [#allocation5], %s301
        // Predicated region
        $region37: #{tpu_custom_call.1} parent=31 // pred_check
          %p303 = pneg %p106
        $region38: #{tpu_custom_call.1} parent=31 // pred_check_branch
          %305 = sbr.rel (%p303) target = $region40
        $region39: #{tpu_custom_call.1} parent=31 // pred_region
          %s307 = ssub.s32 16, 16
          %308 = vsyncadd %s300, %s307
          %s309 = smul.addr %s20, 16
          %s310 = scalar_lea.hbm %s3, %s309
          %s312 = sshll.u32 %s302, 4
          %s313 = int_to_ptr.vmem [resolvable:$true] %s312
          %315 = dma.vmem_to_hbm [thread:$0]  %s313, 16, %s310, %s300
        $region40: #{tpu_custom_call.1} parent=31 // pred_fallthru
          _
      $region32: #{tpu_custom_call.1} parent=5 // pred_fallthru
        _
      %p316 = scmp.le.s32.totalorder 2, %s15
      // Predicated region
      $region41: #{tpu_custom_call.1} parent=5 // pred_check
        %p317 = pneg %p316
      $region42: #{tpu_custom_call.1} parent=5 // pred_check_branch
        %319 = sbr.rel (%p317) target = $region44
      $region43: #{tpu_custom_call.1} parent=5 // pred_region
        %s320 = ssub.s32 %s15, 2
        // Predicated region
        $region45: #{tpu_custom_call.1} parent=43 // pred_check
          %p321 = pneg %p112
        $region46: #{tpu_custom_call.1} parent=43 // pred_check_branch
          %323 = sbr.rel (%p321) target = $region48
        $region47: #{tpu_custom_call.1} parent=43 // pred_region
          %s324 = sand.u32 %s97, 1
          %s325 = scalar_lea.sflag [#allocation4], %s324
          %s326 = sand.u32 %s97, 1
          %s327 = scalar_lea.vmem [#allocation5], %s326
          %328 = dma.done %s325, 16
        $region48: #{tpu_custom_call.1} parent=43 // pred_fallthru
          _
      $region44: #{tpu_custom_call.1} parent=5 // pred_fallthru
        _
    $region6: #{tpu_custom_call.1} parent=1 // loop_footer
      %s19 = sadd.s32 1, %s15
    $region7: #{tpu_custom_call.1} parent=1 // loop_footer_branch
      %14 = sbr.rel target = $region3
    $region8: #{tpu_custom_call.1} parent=1 // loop_exit
      _
    %329 = vsyncpa [#allocation3], 1
    %s330 = scalar_lea.sflag [#allocation3], 1
    %331 = vsyncpa %s330, 1
    %332 = vsyncpa [#allocation4], 1
    %s333 = scalar_lea.sflag [#allocation4], 1
    %334 = vsyncpa %s333, 1

</llo_original>
